<compile_context>
chip_gen: v5e
topology: v5e:2x2
jax: 0.10.0
libtpu: 0.0.40
codegen_flags: <defaults>
</compile_context>

<pallas_src>
import jax
import jax.numpy as jnp
from jax.experimental import pallas as pl
from jax.experimental.pallas import tpu as pltpu


def _scale_kernel(scale_ref, x_ref, o_ref):
    # scale_ref: (1,) f32 in SMEM; x_ref/o_ref: VMEM tiles.
    s = scale_ref[0].astype(o_ref.dtype)
    o_ref[...] = x_ref[...].astype(o_ref.dtype) * s


def _round_up(n, m):
    return -(-n // m) * m


def scale_feature(x, scale, *, block_bytes=2 * 1024 * 1024):
    """out = scale * x via a Pallas TPU kernel. Any input shape/dtype."""
    orig_shape = x.shape
    in_dtype = x.dtype

    # dtype promotion matching torch `python_scalar * tensor`:
    # a float scalar promotes integer/bool tensors to the default float dtype,
    # otherwise the tensor dtype is kept (float scalar does NOT upcast bf16).
    if isinstance(scale, float) and not jnp.issubdtype(in_dtype, jnp.floating):
        out_dtype = jnp.float32
    else:
        out_dtype = in_dtype

    if x.size == 0:
        return jnp.zeros(orig_shape, dtype=out_dtype)

    # --- 3-D view (R, H, W): collapse leading dims only => free bitcast. ---
    if x.ndim == 0:
        view = x.reshape(1, 1, 1)
    elif x.ndim == 1:
        # TODO(synk): 1-D inputs keep a second-minor extent of 1, wasting 7/8
        # sublanes in VMEM/vregs; acceptable for the feature-map use case.
        view = x.reshape(1, 1, orig_shape[0])
    elif x.ndim == 2:
        view = x.reshape(1, *orig_shape)
    else:
        view = x.reshape(-1, orig_shape[-2], orig_shape[-1])
    R, H, W = view.shape

    in_isize = jnp.dtype(in_dtype).itemsize
    out_isize = jnp.dtype(out_dtype).itemsize
    dsize = max(in_isize, out_isize)            # size blocks against the bigger operand
    # Sublane packing of the narrower dtype so block edges never split a
    # packed row group (8 for f32, 16 for bf16, 32 for int8/fp8).
    sub = max(8, 32 // max(1, min(in_isize, out_isize)))

    # VMEM budget per block per operand.  Once the tensor exceeds ~1 MiB,
    # force >= ~4 grid steps (v7x megacore sharding + DMA/compute overlap).
    total_bytes = x.size * dsize
    budget = block_bytes
    if total_bytes > (1 << 20):
        budget = min(budget, max(1 << 17, total_bytes // 4))

    w_pad = _round_up(W, 128)
    plane_vmem = _round_up(H, sub) * w_pad * dsize   # one full (H, W) slab in VMEM
    strip_vmem = sub * w_pad * dsize                 # minimal legal H-strip in VMEM

    if plane_vmem <= budget:
        # Pack several full (H, W) planes per block.
        tr = max(1, min(R, budget // plane_vmem))
        th, tw = H, W
    elif strip_vmem <= budget:
        # Block along H, full-width rows (lane-dense when W % 128 == 0).
        tr, tw = 1, W
        th = min(H, max(sub, (budget // (w_pad * dsize)) // sub * sub))
    else:
        # Very wide rows (or flat 1-D input): block along W in lane multiples.
        tr = 1
        th = min(H, sub)
        tw = min(W, max(128, (budget // (_round_up(th, sub) * dsize)) // 128 * 128))

    grid = (pl.cdiv(R, tr), pl.cdiv(H, th), pl.cdiv(W, tw))

    scale_arr = jnp.full((1,), scale, dtype=jnp.float32)

    out_view = pl.pallas_call(
        _scale_kernel,
        out_shape=jax.ShapeDtypeStruct((R, H, W), out_dtype),
        grid=grid,
        in_specs=[
            # Runtime scalar in SMEM: no retrace/recompile per scale value.
            pl.BlockSpec(memory_space=pltpu.MemorySpace.SMEM),
            pl.BlockSpec((tr, th, tw), lambda r, h, w: (r, h, w)),
        ],
        out_specs=pl.BlockSpec((tr, th, tw), lambda r, h, w: (r, h, w)),
        compiler_params=pltpu.CompilerParams(
            dimension_semantics=("parallel", "parallel", "parallel"),
        ),
    )(scale_arr, view)

    # Re-expand leading dims: another free bitcast.
    return out_view.reshape(orig_shape)


if __name__ == "__main__":
    key = jax.random.PRNGKey(0)
    # Small NCHW input consistent with a conv-style feature map.
    x = jax.random.normal(key, (2, 4, 16, 16), dtype=jnp.float32)
    scale = 0.5

    out = scale_feature(x, scale)
    out = jax.block_until_ready(out)

    ref = scale * x
    assert out.shape == x.shape and out.dtype == ref.dtype
    assert jnp.allclose(out, ref, atol=1e-6, rtol=1e-6)
    print("KERNEL_OK")
</pallas_src>

<mosaic_0001>
module attributes {stable_mosaic.version = 11 : i64} {
  func.func @_scale_kernel(%arg0: i32, %arg1: i32, %arg2: i32, %arg3: memref<1xf32, #tpu.memory_space<smem>>, %arg4: memref<8x16x16xf32, #tpu.memory_space<vmem>>, %arg5: memref<8x16x16xf32, #tpu.memory_space<vmem>>) attributes {dimension_semantics = [#tpu.dimension_semantics<parallel>, #tpu.dimension_semantics<parallel>, #tpu.dimension_semantics<parallel>], iteration_bounds = array<i64: 1, 1, 1>, scalar_prefetch = 0 : i64, scratch_operands = 0 : i64, tpu.core_type = #tpu.core_type<tc>, window_params = [{transform_indices = @transform_0, window_bounds = array<i64: 1>}, {transform_indices = @transform_1, window_bounds = array<i64: 8, 16, 16>}, {transform_indices = @transform_2, window_bounds = array<i64: 8, 16, 16>}]} {
    %c0 = arith.constant 0 : index
    %0 = memref.load %arg3[%c0] : memref<1xf32, #tpu.memory_space<smem>>
    %c0_0 = arith.constant 0 : index
    %c0_1 = arith.constant 0 : index
    %c0_2 = arith.constant 0 : index
    %1 = vector.load %arg4[%c0_0, %c0_1, %c0_2] : memref<8x16x16xf32, #tpu.memory_space<vmem>>, vector<8x16x16xf32>
    %2 = vector.broadcast %0 : f32 to vector<8x16x16xf32>
    %3 = arith.mulf %1, %2 : vector<8x16x16xf32>
    %c0_3 = arith.constant 0 : index
    %c0_4 = arith.constant 0 : index
    %c0_5 = arith.constant 0 : index
    %4 = vector.load %arg5[%c0_3, %c0_4, %c0_5] : memref<8x16x16xf32, #tpu.memory_space<vmem>>, vector<8x16x16xf32>
    tpu.vector_store %arg5[%c0_3, %c0_4, %c0_5], %3 {strides = array<i32>} : memref<8x16x16xf32, #tpu.memory_space<vmem>>, vector<8x16x16xf32>,
    return
  }
  func.func @transform_0(%arg0: i32, %arg1: i32, %arg2: i32) -> i32 {
    %c0_i32 = arith.constant 0 : i32
    %c0_i32_0 = arith.constant 0 : i32
    return %c0_i32 : i32
  }
  func.func @transform_1(%arg0: i32, %arg1: i32, %arg2: i32) -> (i32, i32, i32) {
    %c0_i32 = arith.constant 0 : i32
    return %arg0, %arg1, %arg2 : i32, i32, i32
  }
  func.func @transform_2(%arg0: i32, %arg1: i32, %arg2: i32) -> (i32, i32, i32) {
    %c0_i32 = arith.constant 0 : i32
    return %arg0, %arg1, %arg2 : i32, i32, i32
  }
}

</mosaic_0001>

<llo_original>
// kernel: tpu_custom_call.1
$region0: #{tpu_custom_call.1}
  #allocation0 [shape = 'u32[]', space=smem, size = 0x4, offset = 0x4, fixed_abs, tag = 'smem constant byte address 0x4 - core index']
  #allocation1 [shape = 'u32[72,128]{1,0:T(1,128)}', space=vmem, size = 0x9000, scoped, tag = 'internal scratch']
  #allocation2 [shape = 'f32[1]{0:T(128)S(6)}', space=smem, size = 0x200, scoped, tag = 'scoped memory for tpu_custom_call.1']
  %s0 = inlined_call_operand.<no memory space> [shape: f32[1], index: 0, kind: input, shape index: {}]
  %s1 = inlined_call_operand.hbm [shape: f32[8,16,16], index: 1, kind: input, shape index: {}]
  %s2 = inlined_call_operand.hbm [shape: f32[8,16,16], index: 2, kind: output, shape index: {}]
  %s3 = sld [smem:[#allocation0]]
  $region22: #{tpu_custom_call.1} parent=0
    _
  %s5 = ssub.s32 1, %s3
  %s6 = scalar_select 0, %s5, %s3
  %7 = sst [smem:[#allocation2]] %s0
  $region1: #{tpu_custom_call.1} parent=0
    #allocation3 [shape = 'u8[65536]{0}', space=vmem, size = 0x10000, scoped, tag = 'input window, operand 1, single buffered']
    #allocation4 [shape = 's32[1]{0}', space=sflag, size = 0x4, scoped, tag = 'scoped memory for tpu_custom_call.1']
    #allocation5 [shape = 's32[1]{0}', space=sflag, size = 0x4, scoped, tag = 'scoped memory for tpu_custom_call.1']
    #allocation6 [shape = 'u8[65536]{0}', space=vmem, size = 0x10000, scoped, tag = 'output window, operand 0, single buffered']
    %8 = vsyncpa [#allocation4], 0
    %9 = vsyncpa [#allocation5], 0
    // Predicated region
    $region2: #{tpu_custom_call.1} parent=1 // pred_check
      _
    $region3: #{tpu_custom_call.1} parent=1 // pred_check_branch
      %11 = sbr.rel (0) target = $region5
    $region4: #{tpu_custom_call.1} parent=1 // pred_region
      _
    $region5: #{tpu_custom_call.1} parent=1 // pred_fallthru
      _
    // Predicated region
    $region6: #{tpu_custom_call.1} parent=1 // pred_check
      _
    $region7: #{tpu_custom_call.1} parent=1 // pred_check_branch
      %13 = sbr.rel (0) target = $region9
    $region8: #{tpu_custom_call.1} parent=1 // pred_region
      %15 = vsyncadd [#allocation4], 0
      %s16 = sshll.u32 %s1, 4
      %s17 = int_to_ptr.hbm [resolvable:$true] %s16
      %s18 = sshll.u32 [#allocation3], 4
      %s19 = int_to_ptr.vmem [resolvable:$true] %s18
      %24 = dma.hbm_to_vmem [thread:$0]  %s17, 2048, %s19, [#allocation4], 128, 128, 8
    $region9: #{tpu_custom_call.1} parent=1 // pred_fallthru
      _
    // Predicated region
    $region10: #{tpu_custom_call.1} parent=1 // pred_check
      _
    $region11: #{tpu_custom_call.1} parent=1 // pred_check_branch
      %26 = sbr.rel (0) target = $region13
    $region12: #{tpu_custom_call.1} parent=1 // pred_region
      %28 = dma.done [#allocation4], 2048
    $region13: #{tpu_custom_call.1} parent=1 // pred_fallthru
      _
    %s29 = sld [smem:[#allocation2]]
    %v30 = vld [vmem:[#allocation3] sm:$0xff]
    %v31 = vld [vmem:[#allocation3 + $0x8] sm:$0xff]
    %v32 = vld [vmem:[#allocation3 + $0x10] sm:$0xff]
    %v33 = vld [vmem:[#allocation3 + $0x18] sm:$0xff]
    %v34 = vld [vmem:[#allocation3 + $0x20] sm:$0xff]
    %v35 = vld [vmem:[#allocation3 + $0x28] sm:$0xff]
    %v36 = vld [vmem:[#allocation3 + $0x30] sm:$0xff]
    %v37 = vld [vmem:[#allocation3 + $0x38] sm:$0xff]
    %v38 = vld [vmem:[#allocation3 + $0x40] sm:$0xff]
    %v39 = vld [vmem:[#allocation3 + $0x48] sm:$0xff]
    %v40 = vld [vmem:[#allocation3 + $0x50] sm:$0xff]
    %v41 = vld [vmem:[#allocation3 + $0x58] sm:$0xff]
    %v42 = vld [vmem:[#allocation3 + $0x60] sm:$0xff]
    %v43 = vld [vmem:[#allocation3 + $0x68] sm:$0xff]
    %v44 = vld [vmem:[#allocation3 + $0x70] sm:$0xff]
    %v45 = vld [vmem:[#allocation3 + $0x78] sm:$0xff]
    %v46 = vstv %s29
    %v47 = vmul.f32 %v30, %v46
    %v48 = vmul.f32 %v31, %v46
    %v49 = vmul.f32 %v32, %v46
    %v50 = vmul.f32 %v33, %v46
    %v51 = vmul.f32 %v34, %v46
    %v52 = vmul.f32 %v35, %v46
    %v53 = vmul.f32 %v36, %v46
    %v54 = vmul.f32 %v37, %v46
    %v55 = vmul.f32 %v38, %v46
    %v56 = vmul.f32 %v39, %v46
    %v57 = vmul.f32 %v40, %v46
    %v58 = vmul.f32 %v41, %v46
    %v59 = vmul.f32 %v42, %v46
    %v60 = vmul.f32 %v43, %v46
    %v61 = vmul.f32 %v44, %v46
    %v62 = vmul.f32 %v45, %v46
    %vm63 = vcmask 130048
    %64 = vst.msk [vmem:[#allocation6] sm:$0xff] %vm63, %v47
    %65 = vst.msk [vmem:[#allocation6 + $0x8] sm:$0xff] %vm63, %v48
    %66 = vst.msk [vmem:[#allocation6 + $0x10] sm:$0xff] %vm63, %v49
    %67 = vst.msk [vmem:[#allocation6 + $0x18] sm:$0xff] %vm63, %v50
    %68 = vst.msk [vmem:[#allocation6 + $0x20] sm:$0xff] %vm63, %v51
    %69 = vst.msk [vmem:[#allocation6 + $0x28] sm:$0xff] %vm63, %v52
    %70 = vst.msk [vmem:[#allocation6 + $0x30] sm:$0xff] %vm63, %v53
    %71 = vst.msk [vmem:[#allocation6 + $0x38] sm:$0xff] %vm63, %v54
    %72 = vst.msk [vmem:[#allocation6 + $0x40] sm:$0xff] %vm63, %v55
    %73 = vst.msk [vmem:[#allocation6 + $0x48] sm:$0xff] %vm63, %v56
    %74 = vst.msk [vmem:[#allocation6 + $0x50] sm:$0xff] %vm63, %v57
    %75 = vst.msk [vmem:[#allocation6 + $0x58] sm:$0xff] %vm63, %v58
    %76 = vst.msk [vmem:[#allocation6 + $0x60] sm:$0xff] %vm63, %v59
    %77 = vst.msk [vmem:[#allocation6 + $0x68] sm:$0xff] %vm63, %v60
    %78 = vst.msk [vmem:[#allocation6 + $0x70] sm:$0xff] %vm63, %v61
    %79 = vst.msk [vmem:[#allocation6 + $0x78] sm:$0xff] %vm63, %v62
    // Predicated region
    $region14: #{tpu_custom_call.1} parent=1 // pred_check
      _
    $region15: #{tpu_custom_call.1} parent=1 // pred_check_branch
      %81 = sbr.rel (0) target = $region17
    $region16: #{tpu_custom_call.1} parent=1 // pred_region
      %83 = vsyncadd [#allocation5], 0
      %s84 = sshll.u32 [#allocation6], 4
      %s85 = int_to_ptr.vmem [resolvable:$true] %s84
      %s86 = sshll.u32 %s2, 4
      %s87 = int_to_ptr.hbm [resolvable:$true] %s86
      %92 = dma.vmem_to_hbm [thread:$0]  %s85, 2048, %s87, [#allocation5], 128, 128, 8
    $region17: #{tpu_custom_call.1} parent=1 // pred_fallthru
      _
    // Predicated region
    $region18: #{tpu_custom_call.1} parent=1 // pred_check
      _
    $region19: #{tpu_custom_call.1} parent=1 // pred_check_branch
      %94 = sbr.rel (0) target = $region21
    $region20: #{tpu_custom_call.1} parent=1 // pred_region
      %96 = dma.done [#allocation5], 2048
    $region21: #{tpu_custom_call.1} parent=1 // pred_fallthru
      _
    %97 = vsyncpa [#allocation4], 1
    %98 = vsyncpa [#allocation5], 1

</llo_original>
